<compile_context>
chip_gen: v7x
topology: tpu7x:2x2x1
jax: 0.10.0
libtpu: 0.0.40
codegen_flags: <defaults>
</compile_context>

<pallas_src>
import jax
import jax.numpy as jnp
from jax.experimental import pallas as pl
from jax.experimental.pallas import tpu as pltpu


# ----------------------------------------------------------------------------
# Tiling heuristic
# ----------------------------------------------------------------------------
_LANE = 128
_F32 = 4


def _choose_tiles(n: int, c: int, hw: int, itemsize: int):
    """Pick (bn, t_hw, num_hw_tiles).

    Per-block VMEM accounting (bytes per block element):
      2x double-buffered input + 2x double-buffered output (input dtype)
      + ~3 f32 block-equivalents of in-kernel intermediates.
    Budget is kept ~24 MiB so the real footprint stays well inside the 32 MiB
    vmem_limit_bytes we request (fits every listed generation, incl. v7x's
    64 MiB physical VMEM).
    """
    per_elem_bytes = 4 * itemsize + 3 * _F32
    budget_elems = (24 << 20) // per_elem_bytes
    target_elems = (2 << 20) // itemsize          # ~2 MiB of payload per block
    max_elems = max(_LANE, min(target_elems, budget_elems))

    lanes = (max_elems // c) // _LANE * _LANE
    if lanes < _LANE:
        lanes = _LANE                             # minimum lane-dense tile
    if lanes >= hw:
        t_hw = hw                                 # full spatial extent (always legal)
    else:
        t_hw = lanes                              # multiple of 128 (lane-dense)
    num_hw_tiles = pl.cdiv(hw, t_hw)

    # If the whole image fits in one lane tile, tile over batch instead so DMAs
    # stay large and there are enough grid steps to pipeline.
    bn = 1
    if num_hw_tiles == 1 and n > 1:
        blk_elems = max(1, c * t_hw)
        target_bn = max(1, max_elems // blk_elems)
        for d in range(min(n, target_bn), 0, -1):  # largest divisor of n <= target
            if n % d == 0:
                bn = d
                break
    return bn, t_hw, num_hw_tiles


# ----------------------------------------------------------------------------
# Pallas kernels — each block is (bn, F, K, T_HW); category axis = 2
# ----------------------------------------------------------------------------
def _group_softmax_kernel(x_ref, o_ref):
    x = x_ref[...].astype(jnp.float32)
    m = jnp.max(x, axis=2, keepdims=True)          # (bn, F, 1, T)  sublane reduce
    e = jnp.exp(x - m)                             # EUP
    s = jnp.sum(e, axis=2, keepdims=True)          # (bn, F, 1, T)
    inv = pl.reciprocal(s)                         # one recip per group-column
    o_ref[...] = (e * inv).astype(o_ref.dtype)


def _group_maxmask_kernel(x_ref, o_ref):
    x = x_ref[...]
    m = jnp.max(x, axis=2, keepdims=True)          # (bn, F, 1, T)
    o_ref[...] = x * (x == m).astype(x.dtype)      # matches PyTorch x * mask exactly


# ----------------------------------------------------------------------------
# Wrapper: grid / BlockSpec plumbing
# ----------------------------------------------------------------------------
def cat_factor_2d_pallas(x_nchw: jnp.ndarray, num_factor: int, num_category: int,
                         stochastic: bool = False) -> jnp.ndarray:
    n, c, h, w = x_nchw.shape
    assert c == num_factor * num_category, "C must equal num_factor * num_category"

    hw = h * w
    itemsize = jnp.dtype(x_nchw.dtype).itemsize
    bn, t_hw, num_hw_tiles = _choose_tiles(n, c, hw, itemsize)
    num_b_tiles = n // bn                          # bn divides n by construction

    # (N, C, H, W) -> (N, F, K, H*W): order-preserving (free) reshape; H*W maps
    # to the 128-lane axis, the K reduction runs along sublanes.  No padding.
    x4 = x_nchw.reshape(n, num_factor, num_category, hw)

    kernel = _group_maxmask_kernel if stochastic else _group_softmax_kernel

    cost = pl.CostEstimate(
        flops=4 * n * c * hw,
        transcendentals=0 if stochastic else n * c * hw,
        bytes_accessed=2 * n * c * hw * itemsize,
    )

    block = (bn, num_factor, num_category, t_hw)

    # Larger parallel axis first so v7x's two TensorCores both get work.
    if num_hw_tiles >= num_b_tiles:
        grid = (num_hw_tiles, num_b_tiles)
        idx = lambda t, b: (b, 0, 0, t)
    else:
        grid = (num_b_tiles, num_hw_tiles)
        idx = lambda b, t: (b, 0, 0, t)

    out4 = pl.pallas_call(
        kernel,
        out_shape=jax.ShapeDtypeStruct((n, num_factor, num_category, hw),
                                       x_nchw.dtype),
        grid_spec=pltpu.PrefetchScalarGridSpec(
            num_scalar_prefetch=0,
            grid=grid,
            in_specs=[pl.BlockSpec(block, idx)],
            out_specs=pl.BlockSpec(block, idx),
        ),
        compiler_params=pltpu.CompilerParams(
            dimension_semantics=("parallel", "parallel"),
            vmem_limit_bytes=32 << 20,
        ),
        cost_estimate=cost,
    )(x4)

    return out4.reshape(n, c, h, w)


# ----------------------------------------------------------------------------
# Module wrapper mirroring the nn.Module interface
# ----------------------------------------------------------------------------
class CatFactor2dPallas:
    def __init__(self, num_factor, num_category, stochastic=False):
        self.num_factor = num_factor
        self.num_category = num_category
        self.stochastic = stochastic

    def forward(self, x_nchw):
        assert x_nchw.ndim == 4
        assert x_nchw.shape[1] == self.num_factor * self.num_category
        return cat_factor_2d_pallas(x_nchw, self.num_factor, self.num_category,
                                    self.stochastic)

    def __repr__(self):
        return "CatFactor (factors={}, categories={}, stochastic={})".format(
            self.num_factor, self.num_category, self.stochastic)


# ----------------------------------------------------------------------------
# Demo / smoke test
# ----------------------------------------------------------------------------
if __name__ == "__main__":
    num_factor, num_category = 4, 8           # num_unit = 32 channels
    batch, height, width = 2, 16, 16
    num_unit = num_factor * num_category

    key = jax.random.PRNGKey(0)
    x = jax.random.normal(key, (batch, num_unit, height, width), dtype=jnp.float32)
    xg = x.reshape(batch, num_factor, num_category, height, width)

    # --- softmax mode (default) ---
    mod = CatFactor2dPallas(num_factor, num_category, stochastic=False)
    out = jax.block_until_ready(mod.forward(x))
    ref = jax.nn.softmax(xg, axis=2).reshape(x.shape)
    assert out.shape == x.shape
    assert jnp.allclose(out, ref, atol=1e-5, rtol=1e-5)

    # --- stochastic (max-mask) mode ---
    mod_s = CatFactor2dPallas(num_factor, num_category, stochastic=True)
    out_s = jax.block_until_ready(mod_s.forward(x))
    m = jnp.max(xg, axis=2, keepdims=True)
    ref_s = (xg * (xg == m).astype(x.dtype)).reshape(x.shape)
    assert jnp.allclose(out_s, ref_s, atol=1e-6, rtol=1e-6)

    # --- ragged spatial extent (exercises the masked last lane tile path) ---
    x_odd = jax.random.normal(jax.random.PRNGKey(0), (3, num_unit, 10, 10),
                              dtype=jnp.float32)
    xo = x_odd.reshape(3, num_factor, num_category, 10, 10)
    out_odd = jax.block_until_ready(mod.forward(x_odd))
    ref_odd = jax.nn.softmax(xo, axis=2).reshape(x_odd.shape)
    assert jnp.allclose(out_odd, ref_odd, atol=1e-5, rtol=1e-5)

    print("KERNEL_OK")
</pallas_src>

<mosaic_0001>
module attributes {stable_mosaic.version = 11 : i64} {
  func.func @_group_softmax_kernel(%arg0: i32, %arg1: i32, %arg2: memref<2x4x8x256xf32, #tpu.memory_space<vmem>>, %arg3: memref<2x4x8x256xf32, #tpu.memory_space<vmem>>) attributes {dimension_semantics = [#tpu.dimension_semantics<parallel>, #tpu.dimension_semantics<parallel>], iteration_bounds = array<i64: 1, 1>, scalar_prefetch = 0 : i64, scratch_operands = 0 : i64, tpu.core_type = #tpu.core_type<tc>, window_params = [{transform_indices = @transform_0, window_bounds = array<i64: 2, 4, 8, 256>}, {transform_indices = @transform_1, window_bounds = array<i64: 2, 4, 8, 256>}]} {
    %c0 = arith.constant 0 : index
    %c0_0 = arith.constant 0 : index
    %c0_1 = arith.constant 0 : index
    %c0_2 = arith.constant 0 : index
    %0 = vector.load %arg2[%c0, %c0_0, %c0_1, %c0_2] : memref<2x4x8x256xf32, #tpu.memory_space<vmem>>, vector<2x4x8x256xf32>
    %cst = arith.constant dense<0xFF800000> : vector<2x4x256xf32>
    %1 = vector.multi_reduction <maximumf>, %0, %cst [2] : vector<2x4x8x256xf32> to vector<2x4x256xf32>
    %2 = vector.shape_cast %1 : vector<2x4x256xf32> to vector<2x4x1x256xf32>
    %3 = vector.broadcast %2 : vector<2x4x1x256xf32> to vector<2x4x8x256xf32>
    %4 = arith.subf %0, %3 : vector<2x4x8x256xf32>
    %5 = math.exp %4 : vector<2x4x8x256xf32>
    %cst_3 = arith.constant dense<0.000000e+00> : vector<2x4x256xf32>
    %6 = vector.multi_reduction <add>, %5, %cst_3 [2] : vector<2x4x8x256xf32> to vector<2x4x256xf32>
    %7 = vector.shape_cast %6 : vector<2x4x256xf32> to vector<2x4x1x256xf32>
    %8 = tpu.reciprocal %7 : vector<2x4x1x256xf32> -> vector<2x4x1x256xf32>
    %9 = vector.broadcast %8 : vector<2x4x1x256xf32> to vector<2x4x8x256xf32>
    %10 = arith.mulf %5, %9 : vector<2x4x8x256xf32>
    %c0_4 = arith.constant 0 : index
    %c0_5 = arith.constant 0 : index
    %c0_6 = arith.constant 0 : index
    %c0_7 = arith.constant 0 : index
    %11 = vector.load %arg3[%c0_4, %c0_5, %c0_6, %c0_7] : memref<2x4x8x256xf32, #tpu.memory_space<vmem>>, vector<2x4x8x256xf32>
    tpu.vector_store %arg3[%c0_4, %c0_5, %c0_6, %c0_7], %10 {strides = array<i32>} : memref<2x4x8x256xf32, #tpu.memory_space<vmem>>, vector<2x4x8x256xf32>,
    return
  }
  func.func @transform_0(%arg0: i32, %arg1: i32) -> (i32, i32, i32, i32) {
    %c0_i32 = arith.constant 0 : i32
    %c0_i32_0 = arith.constant 0 : i32
    %c0_i32_1 = arith.constant 0 : i32
    return %arg1, %c0_i32, %c0_i32_0, %arg0 : i32, i32, i32, i32
  }
  func.func @transform_1(%arg0: i32, %arg1: i32) -> (i32, i32, i32, i32) {
    %c0_i32 = arith.constant 0 : i32
    %c0_i32_0 = arith.constant 0 : i32
    %c0_i32_1 = arith.constant 0 : i32
    return %arg1, %c0_i32, %c0_i32_0, %arg0 : i32, i32, i32, i32
  }
}

</mosaic_0001>

<llo_original>
// kernel: tpu_custom_call.1
$region0: #{tpu_custom_call.1}
  #allocation0 [shape = 'u32[]', space=smem, size = 0x4, offset = 0x4, fixed_abs, tag = 'smem constant byte address 0x4 - core index']
  #allocation1 [shape = 'u32[144,128]{1,0:T(1,128)}', space=vmem, size = 0x12000, scoped, tag = 'internal scratch']
  %s0 = inlined_call_operand.hbm [shape: f32[2,4,8,256], index: 0, kind: input, shape index: {}]
  %s1 = inlined_call_operand.hbm [shape: f32[2,4,8,256], index: 1, kind: output, shape index: {}]
  %s2 = sld [smem:[#allocation0]]
  $region18: #{tpu_custom_call.1} parent=0
    _
  %s4 = ssub.s32 1, %s2
  %s5 = scalar_select 0, %s4, %s2
  $region1: #{tpu_custom_call.1} parent=0
    #allocation2 [shape = 'u8[65536]{0}', space=vmem, size = 0x10000, scoped, tag = 'input window, operand 0, single buffered']
    #allocation3 [shape = 's32[1]{0}', space=sflag, size = 0x4, scoped, tag = 'scoped memory for tpu_custom_call.1']
    #allocation4 [shape = 's32[1]{0}', space=sflag, size = 0x4, scoped, tag = 'scoped memory for tpu_custom_call.1']
    #allocation5 [shape = 'u8[65536]{0}', space=vmem, size = 0x10000, scoped, tag = 'output window, operand 0, single buffered']
    %6 = vsyncpa [#allocation3], 0
    %7 = vsyncpa [#allocation4], 0
    // Predicated region
    $region2: #{tpu_custom_call.1} parent=1 // pred_check
      _
    $region3: #{tpu_custom_call.1} parent=1 // pred_check_branch
      %9 = sbr.rel (0) target = $region5
    $region4: #{tpu_custom_call.1} parent=1 // pred_region
      %s11 = ssub.s32 2048, 2048
      %12 = vsyncadd [#allocation3], %s11
      %s13 = sshll.u32 [#allocation2], 4
      %s14 = int_to_ptr.vmem [resolvable:$true] %s13
      %19 = dma.hbm_to_vmem [thread:$0]  %s0, 2048, %s14, [#allocation3], 256, 256, 16
    $region5: #{tpu_custom_call.1} parent=1 // pred_fallthru
      _
    // Predicated region
    $region6: #{tpu_custom_call.1} parent=1 // pred_check
      _
    $region7: #{tpu_custom_call.1} parent=1 // pred_check_branch
      %21 = sbr.rel (0) target = $region9
    $region8: #{tpu_custom_call.1} parent=1 // pred_region
      %22 = dma.done [#allocation3], 2048
    $region9: #{tpu_custom_call.1} parent=1 // pred_fallthru
      _
    %v23 = vld [vmem:[#allocation2] sm:$0xff]
    %v24 = vld [vmem:[#allocation2 + $0x8] sm:$0xff]
    %v25 = vld [vmem:[#allocation2 + $0x10] sm:$0xff]
    %v26 = vld [vmem:[#allocation2 + $0x18] sm:$0xff]
    %v27 = vld [vmem:[#allocation2 + $0x20] sm:$0xff]
    %v28 = vld [vmem:[#allocation2 + $0x28] sm:$0xff]
    %v29 = vld [vmem:[#allocation2 + $0x30] sm:$0xff]
    %v30 = vld [vmem:[#allocation2 + $0x38] sm:$0xff]
    %v31 = vld [vmem:[#allocation2 + $0x40] sm:$0xff]
    %v32 = vld [vmem:[#allocation2 + $0x48] sm:$0xff]
    %v33 = vld [vmem:[#allocation2 + $0x50] sm:$0xff]
    %v34 = vld [vmem:[#allocation2 + $0x58] sm:$0xff]
    %v35 = vld [vmem:[#allocation2 + $0x60] sm:$0xff]
    %v36 = vld [vmem:[#allocation2 + $0x68] sm:$0xff]
    %v37 = vld [vmem:[#allocation2 + $0x70] sm:$0xff]
    %v38 = vld [vmem:[#allocation2 + $0x78] sm:$0xff]
    %v39 = vrot.slane %v23, 4
    %v40 = vmax.f32 %v23, %v39
    %v41 = vrot.slane %v40, 2
    %v42 = vmax.f32 %v40, %v41
    %v43 = vrot.slane %v42, 1
    %v44 = vmax.f32 %v42, %v43
    %v45 = vrot.slane %v24, 4
    %v46 = vmax.f32 %v24, %v45
    %v47 = vrot.slane %v46, 2
    %v48 = vmax.f32 %v46, %v47
    %v49 = vrot.slane %v48, 1
    %v50 = vmax.f32 %v48, %v49
    %v51 = vrot.slane %v25, 4
    %v52 = vmax.f32 %v25, %v51
    %v53 = vrot.slane %v52, 2
    %v54 = vmax.f32 %v52, %v53
    %v55 = vrot.slane %v54, 1
    %v56 = vmax.f32 %v54, %v55
    %v57 = vrot.slane %v26, 4
    %v58 = vmax.f32 %v26, %v57
    %v59 = vrot.slane %v58, 2
    %v60 = vmax.f32 %v58, %v59
    %v61 = vrot.slane %v60, 1
    %v62 = vmax.f32 %v60, %v61
    %v63 = vrot.slane %v27, 4
    %v64 = vmax.f32 %v27, %v63
    %v65 = vrot.slane %v64, 2
    %v66 = vmax.f32 %v64, %v65
    %v67 = vrot.slane %v66, 1
    %v68 = vmax.f32 %v66, %v67
    %v69 = vrot.slane %v28, 4
    %v70 = vmax.f32 %v28, %v69
    %v71 = vrot.slane %v70, 2
    %v72 = vmax.f32 %v70, %v71
    %v73 = vrot.slane %v72, 1
    %v74 = vmax.f32 %v72, %v73
    %v75 = vrot.slane %v29, 4
    %v76 = vmax.f32 %v29, %v75
    %v77 = vrot.slane %v76, 2
    %v78 = vmax.f32 %v76, %v77
    %v79 = vrot.slane %v78, 1
    %v80 = vmax.f32 %v78, %v79
    %v81 = vrot.slane %v30, 4
    %v82 = vmax.f32 %v30, %v81
    %v83 = vrot.slane %v82, 2
    %v84 = vmax.f32 %v82, %v83
    %v85 = vrot.slane %v84, 1
    %v86 = vmax.f32 %v84, %v85
    %v87 = vrot.slane %v31, 4
    %v88 = vmax.f32 %v31, %v87
    %v89 = vrot.slane %v88, 2
    %v90 = vmax.f32 %v88, %v89
    %v91 = vrot.slane %v90, 1
    %v92 = vmax.f32 %v90, %v91
    %v93 = vrot.slane %v32, 4
    %v94 = vmax.f32 %v32, %v93
    %v95 = vrot.slane %v94, 2
    %v96 = vmax.f32 %v94, %v95
    %v97 = vrot.slane %v96, 1
    %v98 = vmax.f32 %v96, %v97
    %v99 = vrot.slane %v33, 4
    %v100 = vmax.f32 %v33, %v99
    %v101 = vrot.slane %v100, 2
    %v102 = vmax.f32 %v100, %v101
    %v103 = vrot.slane %v102, 1
    %v104 = vmax.f32 %v102, %v103
    %v105 = vrot.slane %v34, 4
    %v106 = vmax.f32 %v34, %v105
    %v107 = vrot.slane %v106, 2
    %v108 = vmax.f32 %v106, %v107
    %v109 = vrot.slane %v108, 1
    %v110 = vmax.f32 %v108, %v109
    %v111 = vrot.slane %v35, 4
    %v112 = vmax.f32 %v35, %v111
    %v113 = vrot.slane %v112, 2
    %v114 = vmax.f32 %v112, %v113
    %v115 = vrot.slane %v114, 1
    %v116 = vmax.f32 %v114, %v115
    %v117 = vrot.slane %v36, 4
    %v118 = vmax.f32 %v36, %v117
    %v119 = vrot.slane %v118, 2
    %v120 = vmax.f32 %v118, %v119
    %v121 = vrot.slane %v120, 1
    %v122 = vmax.f32 %v120, %v121
    %v123 = vrot.slane %v37, 4
    %v124 = vmax.f32 %v37, %v123
    %v125 = vrot.slane %v124, 2
    %v126 = vmax.f32 %v124, %v125
    %v127 = vrot.slane %v126, 1
    %v128 = vmax.f32 %v126, %v127
    %v129 = vrot.slane %v38, 4
    %v130 = vmax.f32 %v38, %v129
    %v131 = vrot.slane %v130, 2
    %v132 = vmax.f32 %v130, %v131
    %v133 = vrot.slane %v132, 1
    %v134 = vmax.f32 %v132, %v133
    %v135 = vsub.f32 %v23, %v44
    %v136 = vsub.f32 %v24, %v50
    %v137 = vsub.f32 %v25, %v56
    %v138 = vsub.f32 %v26, %v62
    %v139 = vsub.f32 %v27, %v68
    %v140 = vsub.f32 %v28, %v74
    %v141 = vsub.f32 %v29, %v80
    %v142 = vsub.f32 %v30, %v86
    %v143 = vsub.f32 %v31, %v92
    %v144 = vsub.f32 %v32, %v98
    %v145 = vsub.f32 %v33, %v104
    %v146 = vsub.f32 %v34, %v110
    %v147 = vsub.f32 %v35, %v116
    %v148 = vsub.f32 %v36, %v122
    %v149 = vsub.f32 %v37, %v128
    %v150 = vsub.f32 %v38, %v134
    %v151 = vmul.f32 %v135, 1.442695
    %v152 = vpow.pop %v151
    %v153 = vmul.f32 %v136, 1.442695
    %v154 = vpow.pop %v153
    %v155 = vmul.f32 %v137, 1.442695
    %v156 = vpow.pop %v155
    %v157 = vmul.f32 %v138, 1.442695
    %v158 = vpow.pop %v157
    %v159 = vmul.f32 %v139, 1.442695
    %v160 = vpow.pop %v159
    %v161 = vmul.f32 %v140, 1.442695
    %v162 = vpow.pop %v161
    %v163 = vmul.f32 %v141, 1.442695
    %v164 = vpow.pop %v163
    %v165 = vmul.f32 %v142, 1.442695
    %v166 = vpow.pop %v165
    %v167 = vmul.f32 %v143, 1.442695
    %v168 = vpow.pop %v167
    %v169 = vmul.f32 %v144, 1.442695
    %v170 = vpow.pop %v169
    %v171 = vmul.f32 %v145, 1.442695
    %v172 = vpow.pop %v171
    %v173 = vmul.f32 %v146, 1.442695
    %v174 = vpow.pop %v173
    %v175 = vmul.f32 %v147, 1.442695
    %v176 = vpow.pop %v175
    %v177 = vmul.f32 %v148, 1.442695
    %v178 = vpow.pop %v177
    %v179 = vmul.f32 %v149, 1.442695
    %v180 = vpow.pop %v179
    %v181 = vmul.f32 %v150, 1.442695
    %v182 = vpow.pop %v181
    %v183 = vrot.slane %v152, 4
    %v184 = vadd.f32 %v152, %v183
    %v185 = vrot.slane %v184, 2
    %v186 = vadd.f32 %v184, %v185
    %v187 = vrot.slane %v186, 1
    %v188 = vadd.f32 %v186, %v187
    %v189 = vrot.slane %v154, 4
    %v190 = vadd.f32 %v154, %v189
    %v191 = vrot.slane %v190, 2
    %v192 = vadd.f32 %v190, %v191
    %v193 = vrot.slane %v192, 1
    %v194 = vadd.f32 %v192, %v193
    %v195 = vrot.slane %v156, 4
    %v196 = vadd.f32 %v156, %v195
    %v197 = vrot.slane %v196, 2
    %v198 = vadd.f32 %v196, %v197
    %v199 = vrot.slane %v198, 1
    %v200 = vadd.f32 %v198, %v199
    %v201 = vrot.slane %v158, 4
    %v202 = vadd.f32 %v158, %v201
    %v203 = vrot.slane %v202, 2
    %v204 = vadd.f32 %v202, %v203
    %v205 = vrot.slane %v204, 1
    %v206 = vadd.f32 %v204, %v205
    %v207 = vrot.slane %v160, 4
    %v208 = vadd.f32 %v160, %v207
    %v209 = vrot.slane %v208, 2
    %v210 = vadd.f32 %v208, %v209
    %v211 = vrot.slane %v210, 1
    %v212 = vadd.f32 %v210, %v211
    %v213 = vrot.slane %v162, 4
    %v214 = vadd.f32 %v162, %v213
    %v215 = vrot.slane %v214, 2
    %v216 = vadd.f32 %v214, %v215
    %v217 = vrot.slane %v216, 1
    %v218 = vadd.f32 %v216, %v217
    %v219 = vrot.slane %v164, 4
    %v220 = vadd.f32 %v164, %v219
    %v221 = vrot.slane %v220, 2
    %v222 = vadd.f32 %v220, %v221
    %v223 = vrot.slane %v222, 1
    %v224 = vadd.f32 %v222, %v223
    %v225 = vrot.slane %v166, 4
    %v226 = vadd.f32 %v166, %v225
    %v227 = vrot.slane %v226, 2
    %v228 = vadd.f32 %v226, %v227
    %v229 = vrot.slane %v228, 1
    %v230 = vadd.f32 %v228, %v229
    %v231 = vrot.slane %v168, 4
    %v232 = vadd.f32 %v168, %v231
    %v233 = vrot.slane %v232, 2
    %v234 = vadd.f32 %v232, %v233
    %v235 = vrot.slane %v234, 1
    %v236 = vadd.f32 %v234, %v235
    %v237 = vrot.slane %v170, 4
    %v238 = vadd.f32 %v170, %v237
    %v239 = vrot.slane %v238, 2
    %v240 = vadd.f32 %v238, %v239
    %v241 = vrot.slane %v240, 1
    %v242 = vadd.f32 %v240, %v241
    %v243 = vrot.slane %v172, 4
    %v244 = vadd.f32 %v172, %v243
    %v245 = vrot.slane %v244, 2
    %v246 = vadd.f32 %v244, %v245
    %v247 = vrot.slane %v246, 1
    %v248 = vadd.f32 %v246, %v247
    %v249 = vrot.slane %v174, 4
    %v250 = vadd.f32 %v174, %v249
    %v251 = vrot.slane %v250, 2
    %v252 = vadd.f32 %v250, %v251
    %v253 = vrot.slane %v252, 1
    %v254 = vadd.f32 %v252, %v253
    %v255 = vrot.slane %v176, 4
    %v256 = vadd.f32 %v176, %v255
    %v257 = vrot.slane %v256, 2
    %v258 = vadd.f32 %v256, %v257
    %v259 = vrot.slane %v258, 1
    %v260 = vadd.f32 %v258, %v259
    %v261 = vrot.slane %v178, 4
    %v262 = vadd.f32 %v178, %v261
    %v263 = vrot.slane %v262, 2
    %v264 = vadd.f32 %v262, %v263
    %v265 = vrot.slane %v264, 1
    %v266 = vadd.f32 %v264, %v265
    %v267 = vrot.slane %v180, 4
    %v268 = vadd.f32 %v180, %v267
    %v269 = vrot.slane %v268, 2
    %v270 = vadd.f32 %v268, %v269
    %v271 = vrot.slane %v270, 1
    %v272 = vadd.f32 %v270, %v271
    %v273 = vrot.slane %v182, 4
    %v274 = vadd.f32 %v182, %v273
    %v275 = vrot.slane %v274, 2
    %v276 = vadd.f32 %v274, %v275
    %v277 = vrot.slane %v276, 1
    %v278 = vadd.f32 %v276, %v277
    %v279 = vrcp.pop %v188
    %v280 = vrcp.pop %v194
    %v281 = vrcp.pop %v200
    %v282 = vrcp.pop %v206
    %v283 = vrcp.pop %v212
    %v284 = vrcp.pop %v218
    %v285 = vrcp.pop %v224
    %v286 = vrcp.pop %v230
    %v287 = vrcp.pop %v236
    %v288 = vrcp.pop %v242
    %v289 = vrcp.pop %v248
    %v290 = vrcp.pop %v254
    %v291 = vrcp.pop %v260
    %v292 = vrcp.pop %v266
    %v293 = vrcp.pop %v272
    %v294 = vrcp.pop %v278
    %v295 = vmul.f32 %v152, %v279
    %v296 = vmul.f32 %v154, %v280
    %v297 = vmul.f32 %v156, %v281
    %v298 = vmul.f32 %v158, %v282
    %v299 = vmul.f32 %v160, %v283
    %v300 = vmul.f32 %v162, %v284
    %v301 = vmul.f32 %v164, %v285
    %v302 = vmul.f32 %v166, %v286
    %v303 = vmul.f32 %v168, %v287
    %v304 = vmul.f32 %v170, %v288
    %v305 = vmul.f32 %v172, %v289
    %v306 = vmul.f32 %v174, %v290
    %v307 = vmul.f32 %v176, %v291
    %v308 = vmul.f32 %v178, %v292
    %v309 = vmul.f32 %v180, %v293
    %v310 = vmul.f32 %v182, %v294
    %311 = vst [vmem:[#allocation5] sm:$0xff] %v295
    %312 = vst [vmem:[#allocation5 + $0x8] sm:$0xff] %v296
    %313 = vst [vmem:[#allocation5 + $0x10] sm:$0xff] %v297
    %314 = vst [vmem:[#allocation5 + $0x18] sm:$0xff] %v298
    %315 = vst [vmem:[#allocation5 + $0x20] sm:$0xff] %v299
    %316 = vst [vmem:[#allocation5 + $0x28] sm:$0xff] %v300
    %317 = vst [vmem:[#allocation5 + $0x30] sm:$0xff] %v301
    %318 = vst [vmem:[#allocation5 + $0x38] sm:$0xff] %v302
    %319 = vst [vmem:[#allocation5 + $0x40] sm:$0xff] %v303
    %320 = vst [vmem:[#allocation5 + $0x48] sm:$0xff] %v304
    %321 = vst [vmem:[#allocation5 + $0x50] sm:$0xff] %v305
    %322 = vst [vmem:[#allocation5 + $0x58] sm:$0xff] %v306
    %323 = vst [vmem:[#allocation5 + $0x60] sm:$0xff] %v307
    %324 = vst [vmem:[#allocation5 + $0x68] sm:$0xff] %v308
    %325 = vst [vmem:[#allocation5 + $0x70] sm:$0xff] %v309
    %326 = vst [vmem:[#allocation5 + $0x78] sm:$0xff] %v310
    // Predicated region
    $region10: #{tpu_custom_call.1} parent=1 // pred_check
      _
    $region11: #{tpu_custom_call.1} parent=1 // pred_check_branch
      %328 = sbr.rel (0) target = $region13
    $region12: #{tpu_custom_call.1} parent=1 // pred_region
      %s330 = ssub.s32 2048, 2048
      %331 = vsyncadd [#allocation4], %s330
      %s332 = sshll.u32 [#allocation5], 4
      %s333 = int_to_ptr.vmem [resolvable:$true] %s332
      %338 = dma.vmem_to_hbm [thread:$0]  %s333, 2048, %s1, [#allocation4], 256, 256, 16
    $region13: #{tpu_custom_call.1} parent=1 // pred_fallthru
      _
    // Predicated region
    $region14: #{tpu_custom_call.1} parent=1 // pred_check
      _
    $region15: #{tpu_custom_call.1} parent=1 // pred_check_branch
      %340 = sbr.rel (0) target = $region17
    $region16: #{tpu_custom_call.1} parent=1 // pred_region
      %341 = dma.done [#allocation4], 2048
    $region17: #{tpu_custom_call.1} parent=1 // pred_fallthru
      _
    %342 = vsyncpa [#allocation3], 1
    %343 = vsyncpa [#allocation4], 1

</llo_original>
